<compile_context>
chip_gen: v6e
topology: v6e:2x2x1
jax: 0.10.0
libtpu: 0.0.40
codegen_flags: <defaults>
</compile_context>

<pallas_src>
import jax
import jax.numpy as jnp
from jax.experimental import pallas as pl
from jax.experimental.pallas import tpu as pltpu


def _round_up(x: int, m: int) -> int:
    return (x + m - 1) // m * m


def _linear_kernel_f32_out(x_ref, w_ref, b_ref, o_ref):
    """y = x @ W + b, accumulating f32 directly into the resident output block."""
    k = pl.program_id(2)
    contrib = jnp.dot(x_ref[...], w_ref[...], preferred_element_type=jnp.float32)

    @pl.when(k == 0)
    def _init():
        # Bias added exactly once, on the first K step.
        o_ref[...] = contrib + b_ref[...]

    @pl.when(k > 0)
    def _accum():
        o_ref[...] += contrib


def _linear_kernel_lowp_out(x_ref, w_ref, b_ref, o_ref, acc_ref):
    """Same matmul with an explicit f32 VMEM accumulator (for bf16/low-precision outputs)."""
    k = pl.program_id(2)

    @pl.when(k == 0)
    def _init():
        acc_ref[...] = jnp.zeros_like(acc_ref)

    acc_ref[...] += jnp.dot(x_ref[...], w_ref[...], preferred_element_type=jnp.float32)

    @pl.when(k == pl.num_programs(2) - 1)
    def _finalize():
        o_ref[...] = (acc_ref[...] + b_ref[...]).astype(o_ref.dtype)


class PallasLinear:
    """y = x @ weight.T + bias, weight in PyTorch [OUT, IN] convention."""

    # Below this many FLOPs a standalone pallas_call is pure launch/pad overhead.
    _MIN_PALLAS_FLOPS = 10_000_000

    def __init__(self, weight, bias, *, compute_dtype=jnp.float32,
                 tm=None, tn=None, tk=None, w_buffer_count=None):
        OUT, IN = weight.shape
        self.in_features = IN
        self.out_features = OUT
        self.compute_dtype = jnp.dtype(compute_dtype)
        # Kept for the small-problem XLA fallback path.
        self.weight = weight
        self.bias = bias

        # Tile defaults: 8-aligned M (per call), 128-aligned N/K, sized for big problems.
        tn_full = _round_up(OUT, 128)
        if tn is None:
            tn = min(512, tn_full)
            # v7x has 2 TensorCores: if the whole N would fit one tile but is big enough,
            # split into >=2 lane-dense N tiles so the "parallel" grid axes can shard.
            if tn == tn_full and tn_full >= 256:
                tn = _round_up(tn_full // 2, 128)
        self.tn = tn
        self.tk = tk or min(1024, _round_up(IN, 128))
        self._tm_hint = tm  # tm depends on the batch; resolved per call.
        self.w_buffer_count = w_buffer_count  # e.g. 3 on v5e if the K loop shows exposed DMA.

        # One-time parameter prep (hoisted out of forward): canonical [K, N] weight,
        # zero-padded so every weight / bias block read is fully in-bounds and aligned.
        Kp = _round_up(IN, self.tk)
        Np = _round_up(OUT, self.tn)
        w_kn = jnp.transpose(weight).astype(self.compute_dtype)   # [IN, OUT]
        self.w_padded = jnp.zeros((Kp, Np), self.compute_dtype).at[:IN, :OUT].set(w_kn)
        self.b_padded = jnp.zeros((1, Np), jnp.float32).at[:, :OUT].set(
            bias.astype(jnp.float32).reshape(1, OUT))
        self.Kp, self.Np = Kp, Np

    def __call__(self, x, *, force_pallas=False):
        B, IN = x.shape
        assert IN == self.in_features, f"expected last dim {self.in_features}, got {IN}"
        OUT = self.out_features

        flops = 2 * B * IN * OUT
        if not force_pallas and flops < self._MIN_PALLAS_FLOPS:
            # Small-problem gate: let XLA handle (and fuse) the tiny linear.
            return (x @ self.weight.T + self.bias).astype(x.dtype)

        tm = self._tm_hint or min(512, _round_up(B, 8))
        tn, tk = self.tn, self.tk
        Kp, Np = self.Kp, self.Np

        # Only K needs explicit zero padding (garbage K would corrupt the dot).
        # Partial M / N edge blocks are handled by Pallas with masked stores.
        xp = x.astype(self.compute_dtype)
        if Kp != IN:
            xp = jnp.zeros((B, Kp), self.compute_dtype).at[:, :IN].set(xp)

        grid = (pl.cdiv(B, tm), Np // tn, Kp // tk)

        out_dtype = x.dtype
        use_scratch = jnp.dtype(out_dtype) != jnp.dtype(jnp.float32)
        kernel = _linear_kernel_lowp_out if use_scratch else _linear_kernel_f32_out
        scratch_shapes = [pltpu.VMEM((tm, tn), jnp.float32)] if use_scratch else []

        in_itemsize = self.compute_dtype.itemsize
        out_itemsize = jnp.dtype(out_dtype).itemsize

        # VMEM budget: double-buffered x / W / bias / output (+ optional f32 scratch).
        vmem_bytes = (2 * (tm * tk + tk * tn) * in_itemsize
                      + 2 * tn * 4
                      + 2 * tm * tn * out_itemsize
                      + (tm * tn * 4 if use_scratch else 0))
        vmem_limit = None
        if vmem_bytes > (32 << 20):
            # Raise the scoped limit, but stay under v7x's 64 MiB physical ceiling.
            vmem_limit = min(vmem_bytes + (4 << 20), 64 << 20)

        w_spec_kwargs = {}
        if self.w_buffer_count is not None:
            w_spec_kwargs["pipeline_mode"] = pl.Buffered(self.w_buffer_count)

        n_m_tiles, n_n_tiles = grid[0], grid[1]
        bytes_accessed = (B * Kp * n_n_tiles * in_itemsize      # x re-streamed per N tile
                          + Kp * Np * n_m_tiles * in_itemsize   # W re-streamed per M tile
                          + Np * n_m_tiles * 4                  # bias per M tile
                          + B * OUT * out_itemsize)             # output written once

        out = pl.pallas_call(
            kernel,
            out_shape=jax.ShapeDtypeStruct((B, OUT), out_dtype),
            grid_spec=pltpu.PrefetchScalarGridSpec(
                num_scalar_prefetch=0,
                grid=grid,
                in_specs=[
                    pl.BlockSpec((tm, tk), lambda i, j, k: (i, k)),                  # x tile
                    pl.BlockSpec((tk, tn), lambda i, j, k: (k, j), **w_spec_kwargs),  # W[K,N] tile
                    pl.BlockSpec((1, tn), lambda i, j, k: (0, j)),                   # bias tile
                ],
                out_specs=pl.BlockSpec((tm, tn), lambda i, j, k: (i, j)),
                scratch_shapes=scratch_shapes,
            ),
            compiler_params=pltpu.CompilerParams(
                dimension_semantics=("parallel", "parallel", "arbitrary"),
                vmem_limit_bytes=vmem_limit,
            ),
            cost_estimate=pl.CostEstimate(
                flops=2 * B * Kp * Np,
                transcendentals=0,
                bytes_accessed=int(bytes_accessed),
            ),
        )(xp, self.w_padded, self.b_padded)

        return out


if __name__ == "__main__":
    key = jax.random.PRNGKey(0)
    kx, kw, kb = jax.random.split(key, 3)

    B, IN, OUT = 8, 10, 10

    # Deterministic parameter init (mimicking torch.nn.Linear's uniform init range).
    bound = 1.0 / (IN ** 0.5)
    weight = jax.random.uniform(kw, (OUT, IN), jnp.float32, -bound, bound)
    bias = jax.random.uniform(kb, (OUT,), jnp.float32, -bound, bound)
    x = jax.random.normal(kx, (B, IN), jnp.float32)

    y_ref = x @ weight.T + bias

    # 1) f32 Pallas kernel path (forced: at this tiny size the gate would route to XLA).
    lin = PallasLinear(weight, bias)
    y = lin(x, force_pallas=True)
    jax.block_until_ready(y)
    assert y.shape == (B, OUT), f"bad output shape {y.shape}"
    assert jnp.allclose(y, y_ref, atol=1e-5, rtol=1e-5), "pallas f32 mismatch vs reference"

    # 2) Default (gated) path: tiny problem short-circuits to plain XLA.
    y_gated = lin(x)
    jax.block_until_ready(y_gated)
    assert jnp.allclose(y_gated, y_ref, atol=1e-5, rtol=1e-5), "gated path mismatch"

    # 3) bf16 compute path (halved HBM/VMEM traffic, f32 accumulation, f32 output).
    lin_bf16 = PallasLinear(weight, bias, compute_dtype=jnp.bfloat16)
    y_bf16 = lin_bf16(x, force_pallas=True)
    jax.block_until_ready(y_bf16)
    assert jnp.allclose(y_bf16, y_ref, atol=5e-2, rtol=5e-2), "pallas bf16 mismatch"

    # TODO(synk): per-generation weight quantization (int8 on v5e/v6e, fp8 on v7x) is left out.
    print("KERNEL_OK")
</pallas_src>

<mosaic_0001>
module attributes {stable_mosaic.version = 11 : i64} {
  func.func @_linear_kernel_f32_out(%arg0: i32, %arg1: i32, %arg2: i32, %arg3: memref<8x128xf32, #tpu.memory_space<vmem>>, %arg4: memref<128x128xf32, #tpu.memory_space<vmem>>, %arg5: memref<1x128xf32, #tpu.memory_space<vmem>>, %arg6: memref<8x128xf32, #tpu.memory_space<vmem>>) attributes {dimension_semantics = [#tpu.dimension_semantics<parallel>, #tpu.dimension_semantics<parallel>, #tpu.dimension_semantics<arbitrary>], iteration_bounds = array<i64: 1, 1, 1>, scalar_prefetch = 0 : i64, scratch_operands = 0 : i64, tpu.core_type = #tpu.core_type<tc>, window_params = [{transform_indices = @transform_0, window_bounds = array<i64: 8, 128>}, {transform_indices = @transform_1, window_bounds = array<i64: 128, 128>}, {transform_indices = @transform_2, window_bounds = array<i64: 1, 128>}, {transform_indices = @transform_3, window_bounds = array<i64: 8, 128>}]} {
    %c0 = arith.constant 0 : index
    %c0_0 = arith.constant 0 : index
    %0 = vector.load %arg3[%c0, %c0_0] : memref<8x128xf32, #tpu.memory_space<vmem>>, vector<8x128xf32>
    %c0_1 = arith.constant 0 : index
    %c0_2 = arith.constant 0 : index
    %1 = vector.load %arg4[%c0_1, %c0_2] : memref<128x128xf32, #tpu.memory_space<vmem>>, vector<128x128xf32>
    %cst = arith.constant dense<0.000000e+00> : vector<8x128xf32>
    %2 = tpu.matmul %0, %1, %cst {dimension_numbers = #tpu.dot_dimension_numbers<[1], [0], [0], [1], [0, 0, 1, 1], [], []>} : vector<8x128xf32>, vector<128x128xf32>, vector<8x128xf32> -> vector<8x128xf32>
    %c0_i32 = arith.constant 0 : i32
    %3 = arith.cmpi eq, %arg2, %c0_i32 : i32
    %4 = arith.extui %3 : i1 to i32
    %c0_i32_3 = arith.constant 0 : i32
    %5 = arith.cmpi ne, %4, %c0_i32_3 : i32
    scf.if %5 {
      %c0_6 = arith.constant 0 : index
      %c0_7 = arith.constant 0 : index
      %9 = vector.load %arg5[%c0_6, %c0_7] : memref<1x128xf32, #tpu.memory_space<vmem>>, vector<1x128xf32>
      %10 = vector.broadcast %9 : vector<1x128xf32> to vector<8x128xf32>
      %11 = arith.addf %2, %10 : vector<8x128xf32>
      %c0_8 = arith.constant 0 : index
      %c0_9 = arith.constant 0 : index
      %12 = vector.load %arg6[%c0_8, %c0_9] : memref<8x128xf32, #tpu.memory_space<vmem>>, vector<8x128xf32>
      tpu.vector_store %arg6[%c0_8, %c0_9], %11 {strides = array<i32>} : memref<8x128xf32, #tpu.memory_space<vmem>>, vector<8x128xf32>,
    } else {
    }
    %c0_i32_4 = arith.constant 0 : i32
    %6 = arith.cmpi sgt, %arg2, %c0_i32_4 : i32
    %7 = arith.extui %6 : i1 to i32
    %c0_i32_5 = arith.constant 0 : i32
    %8 = arith.cmpi ne, %7, %c0_i32_5 : i32
    scf.if %8 {
      %c0_6 = arith.constant 0 : index
      %c0_7 = arith.constant 0 : index
      %9 = vector.load %arg6[%c0_6, %c0_7] : memref<8x128xf32, #tpu.memory_space<vmem>>, vector<8x128xf32>
      %10 = arith.addf %9, %2 : vector<8x128xf32>
      %c0_8 = arith.constant 0 : index
      %c0_9 = arith.constant 0 : index
      %11 = vector.load %arg6[%c0_8, %c0_9] : memref<8x128xf32, #tpu.memory_space<vmem>>, vector<8x128xf32>
      tpu.vector_store %arg6[%c0_8, %c0_9], %10 {strides = array<i32>} : memref<8x128xf32, #tpu.memory_space<vmem>>, vector<8x128xf32>,
    } else {
    }
    return
  }
  func.func @transform_0(%arg0: i32, %arg1: i32, %arg2: i32) -> (i32, i32) {
    %c0_i32 = arith.constant 0 : i32
    return %arg0, %arg2 : i32, i32
  }
  func.func @transform_1(%arg0: i32, %arg1: i32, %arg2: i32) -> (i32, i32) {
    %c0_i32 = arith.constant 0 : i32
    return %arg2, %arg1 : i32, i32
  }
  func.func @transform_2(%arg0: i32, %arg1: i32, %arg2: i32) -> (i32, i32) {
    %c0_i32 = arith.constant 0 : i32
    %c0_i32_0 = arith.constant 0 : i32
    return %c0_i32, %arg1 : i32, i32
  }
  func.func @transform_3(%arg0: i32, %arg1: i32, %arg2: i32) -> (i32, i32) {
    %c0_i32 = arith.constant 0 : i32
    return %arg0, %arg1 : i32, i32
  }
}

</mosaic_0001>

<llo_original>
// kernel: tpu_custom_call.1
$region0: #{tpu_custom_call.1}
  #allocation0 [shape = 'u32[]', space=smem, size = 0x4, offset = 0x4, fixed_abs, tag = 'smem constant byte address 0x4 - core index']
  #allocation1 [shape = 'u32[144,128]{1,0:T(1,128)}', space=vmem, size = 0x12000, scoped, tag = 'internal scratch']
  %s0 = inlined_call_operand.hbm [shape: f32[8,128], index: 0, kind: input, shape index: {}]
  %s1 = inlined_call_operand.hbm [shape: f32[128,128], index: 1, kind: input, shape index: {}]
  %s2 = inlined_call_operand.vmem [shape: f32[1,128], index: 2, kind: input, shape index: {}]
  %s3 = inlined_call_operand.hbm [shape: f32[8,10], index: 3, kind: output, shape index: {}]
  %s4 = sld [smem:[#allocation0]]
  $region38: #{tpu_custom_call.1} parent=0
    _
  %s6 = ssub.s32 1, %s4
  %s7 = scalar_select 0, %s6, %s4
  $region1: #{tpu_custom_call.1} parent=0
    #allocation2 [shape = 'u8[4096]{0}', space=vmem, size = 0x1000, scoped, tag = 'input window, operand 0, single buffered']
    #allocation3 [shape = 's32[1]{0}', space=sflag, size = 0x4, scoped, tag = 'scoped memory for tpu_custom_call.1']
    #allocation4 [shape = 's32[1]{0}', space=sflag, size = 0x4, scoped, tag = 'scoped memory for tpu_custom_call.1']
    #allocation5 [shape = 'u8[65536]{0}', space=vmem, size = 0x10000, scoped, tag = 'input window, operand 1, single buffered']
    #allocation6 [shape = 's32[1]{0}', space=sflag, size = 0x4, scoped, tag = 'scoped memory for tpu_custom_call.1']
    #allocation7 [shape = 'u8[4096]{0}', space=vmem, size = 0x1000, scoped, tag = 'output window, operand 0, single buffered']
    %8 = vsyncpa [#allocation3], 0
    %9 = vsyncpa [#allocation6], 0
    %10 = vsyncpa [#allocation4], 0
    // Predicated region
    $region2: #{tpu_custom_call.1} parent=1 // pred_check
      _
    $region3: #{tpu_custom_call.1} parent=1 // pred_check_branch
      %12 = sbr.rel (0) target = $region5
    $region4: #{tpu_custom_call.1} parent=1 // pred_region
      %s14 = ssub.s32 128, 128
      %15 = vsyncadd [#allocation3], %s14
      %s17 = sshll.u32 [#allocation2], 4
      %s18 = int_to_ptr.vmem [resolvable:$true] %s17
      %20 = dma.hbm_to_vmem [thread:$0]  %s0, 128, %s18, [#allocation3]
    $region5: #{tpu_custom_call.1} parent=1 // pred_fallthru
      _
    // Predicated region
    $region6: #{tpu_custom_call.1} parent=1 // pred_check
      _
    $region7: #{tpu_custom_call.1} parent=1 // pred_check_branch
      %22 = sbr.rel (0) target = $region9
    $region8: #{tpu_custom_call.1} parent=1 // pred_region
      %s24 = ssub.s32 2048, 2048
      %25 = vsyncadd [#allocation6], %s24
      %s26 = sshll.u32 [#allocation5], 4
      %s27 = int_to_ptr.vmem [resolvable:$true] %s26
      %32 = dma.hbm_to_vmem [thread:$0]  %s1, 2048, %s27, [#allocation6], 128, 128, 8
    $region9: #{tpu_custom_call.1} parent=1 // pred_fallthru
      _
    // Predicated region
    $region10: #{tpu_custom_call.1} parent=1 // pred_check
      _
    $region11: #{tpu_custom_call.1} parent=1 // pred_check_branch
      %34 = sbr.rel (0) target = $region13
    $region12: #{tpu_custom_call.1} parent=1 // pred_region
      _
    $region13: #{tpu_custom_call.1} parent=1 // pred_fallthru
      _
    // Predicated region
    $region14: #{tpu_custom_call.1} parent=1 // pred_check
      _
    $region15: #{tpu_custom_call.1} parent=1 // pred_check_branch
      %36 = sbr.rel (0) target = $region17
    $region16: #{tpu_custom_call.1} parent=1 // pred_region
      %37 = dma.done [#allocation3], 128
    $region17: #{tpu_custom_call.1} parent=1 // pred_fallthru
      _
    // Predicated region
    $region18: #{tpu_custom_call.1} parent=1 // pred_check
      _
    $region19: #{tpu_custom_call.1} parent=1 // pred_check_branch
      %39 = sbr.rel (0) target = $region21
    $region20: #{tpu_custom_call.1} parent=1 // pred_region
      %40 = dma.done [#allocation6], 2048
    $region21: #{tpu_custom_call.1} parent=1 // pred_fallthru
      _
    %v41 = vld [vmem:[#allocation2] sm:$0xff]
    %v42 = vld [vmem:[#allocation5] sm:$0xff]
    %v43 = vld [vmem:[#allocation5 + $0x8] sm:$0xff]
    %v44 = vld [vmem:[#allocation5 + $0x10] sm:$0xff]
    %v45 = vld [vmem:[#allocation5 + $0x18] sm:$0xff]
    %v46 = vld [vmem:[#allocation5 + $0x20] sm:$0xff]
    %v47 = vld [vmem:[#allocation5 + $0x28] sm:$0xff]
    %v48 = vld [vmem:[#allocation5 + $0x30] sm:$0xff]
    %v49 = vld [vmem:[#allocation5 + $0x38] sm:$0xff]
    %v50 = vld [vmem:[#allocation5 + $0x40] sm:$0xff]
    %v51 = vld [vmem:[#allocation5 + $0x48] sm:$0xff]
    %v52 = vld [vmem:[#allocation5 + $0x50] sm:$0xff]
    %v53 = vld [vmem:[#allocation5 + $0x58] sm:$0xff]
    %v54 = vld [vmem:[#allocation5 + $0x60] sm:$0xff]
    %v55 = vld [vmem:[#allocation5 + $0x68] sm:$0xff]
    %v56 = vld [vmem:[#allocation5 + $0x70] sm:$0xff]
    %v57 = vld [vmem:[#allocation5 + $0x78] sm:$0xff]
    %58 = vmatprep.subr.mxu0 0.0
    %59 = vmatpush1.msra.mxu0 %v57
    %60 = vmatprep.subr.mxu0 0.0
    %61 = vmatpush1.msra.mxu0 %v56
    %62 = vmatprep.subr.mxu0 0.0
    %63 = vmatpush1.msra.mxu0 %v55
    %64 = vmatprep.subr.mxu0 0.0
    %65 = vmatpush1.msra.mxu0 %v54
    %66 = vmatprep.subr.mxu0 0.0
    %67 = vmatpush1.msra.mxu0 %v53
    %68 = vmatprep.subr.mxu0 0.0
    %69 = vmatpush1.msra.mxu0 %v52
    %70 = vmatprep.subr.mxu0 0.0
    %71 = vmatpush1.msra.mxu0 %v51
    %72 = vmatprep.subr.mxu0 0.0
    %73 = vmatpush1.msra.mxu0 %v50
    %74 = vmatprep.subr.mxu0 0.0
    %75 = vmatpush1.msra.mxu0 %v49
    %76 = vmatprep.subr.mxu0 0.0
    %77 = vmatpush1.msra.mxu0 %v48
    %78 = vmatprep.subr.mxu0 0.0
    %79 = vmatpush1.msra.mxu0 %v47
    %80 = vmatprep.subr.mxu0 0.0
    %81 = vmatpush1.msra.mxu0 %v46
    %82 = vmatprep.subr.mxu0 0.0
    %83 = vmatpush1.msra.mxu0 %v45
    %84 = vmatprep.subr.mxu0 0.0
    %85 = vmatpush1.msra.mxu0 %v44
    %86 = vmatprep.subr.mxu0 0.0
    %87 = vmatpush1.msra.mxu0 %v43
    %88 = vmatprep.subr.mxu0 0.0
    %89 = vmatpush1.msra.mxu0 %v42
    %90 = vmatprep.subr.mxu0 0.0
    %91 = vmatpush2.msra.mxu0 0.0
    %92 = vmatprep.subr.mxu0 0.0
    %93 = vmatpush2.msra.mxu0 0.0
    %94 = vmatprep.subr.mxu0 0.0
    %95 = vmatpush2.msra.mxu0 0.0
    %96 = vmatprep.subr.mxu0 0.0
    %97 = vmatpush2.msra.mxu0 0.0
    %98 = vmatprep.subr.mxu0 0.0
    %99 = vmatpush2.msra.mxu0 0.0
    %100 = vmatprep.subr.mxu0 0.0
    %101 = vmatpush2.msra.mxu0 0.0
    %102 = vmatprep.subr.mxu0 0.0
    %103 = vmatpush2.msra.mxu0 0.0
    %104 = vmatprep.subr.mxu0 0.0
    %105 = vmatpush2.msra.mxu0 0.0
    %106 = vmatprep.subr.mxu0 0.0
    %107 = vmatpush2.msra.mxu0 0.0
    %108 = vmatprep.subr.mxu0 0.0
    %109 = vmatpush2.msra.mxu0 0.0
    %110 = vmatprep.subr.mxu0 0.0
    %111 = vmatpush2.msra.mxu0 0.0
    %112 = vmatprep.subr.mxu0 0.0
    %113 = vmatpush2.msra.mxu0 0.0
    %114 = vmatprep.subr.mxu0 0.0
    %115 = vmatpush2.msra.mxu0 0.0
    %116 = vmatprep.subr.mxu0 0.0
    %117 = vmatpush2.msra.mxu0 0.0
    %118 = vmatprep.subr.mxu0 0.0
    %119 = vmatpush2.msra.mxu0 0.0
    %120 = vmatprep.subr.mxu0 0.0
    %121 = vmatpush2.msra.mxu0 0.0
    %122 = vmatprep.mubr.f32.mxu0 0.0
    %123 = vmatmul.mubr.f32.gmra.mxu0 %v41
    %v124 = vpop.f32.mrf.mxu0
    %v125 = vadd.f32 0.0, %v124
    %v126 = vpop.f32.mrf.mxu0
    %127 = vdwg.mxu0
    %p128 = scmp.eq.s32.totalorder 0, 0
    // Predicated region
    $region22: #{tpu_custom_call.1} parent=1 // pred_check
      %p129 = pneg %p128
    $region23: #{tpu_custom_call.1} parent=1 // pred_check_branch
      %131 = sbr.rel (%p129) target = $region25
    $region24: #{tpu_custom_call.1} parent=1 // pred_region
      %v132 = vld [vmem:[%s2] sm:$0x1]
      %v134 = vlaneseq
      %v135 = vshrl.u32 %v134, 7
      %v136 = vsub.s32 0, %v135
      %v137 = vrot.slane %v132, %v136
      %v139 = vadd.f32 %v125, %v137
      %140 = vst [vmem:[#allocation7] sm:$0xff] %v139
    $region25: #{tpu_custom_call.1} parent=1 // pred_fallthru
      _
    %p141 = scmp.gt.s32.totalorder 0, 0
    // Predicated region
    $region26: #{tpu_custom_call.1} parent=1 // pred_check
      %p142 = pneg %p141
    $region27: #{tpu_custom_call.1} parent=1 // pred_check_branch
      %144 = sbr.rel (%p142) target = $region29
    $region28: #{tpu_custom_call.1} parent=1 // pred_region
      %v145 = vld [vmem:[#allocation7] sm:$0xff]
      %v146 = vadd.f32 %v145, %v125
      %147 = vst [vmem:[#allocation7] sm:$0xff] %v146
    $region29: #{tpu_custom_call.1} parent=1 // pred_fallthru
      _
    // Predicated region
    $region30: #{tpu_custom_call.1} parent=1 // pred_check
      _
    $region31: #{tpu_custom_call.1} parent=1 // pred_check_branch
      %149 = sbr.rel (0) target = $region33
    $region32: #{tpu_custom_call.1} parent=1 // pred_region
      %s151 = ssub.s32 128, 128
      %152 = vsyncadd [#allocation4], %s151
      %s154 = sshll.u32 [#allocation7], 4
      %s155 = int_to_ptr.vmem [resolvable:$true] %s154
      %157 = dma.vmem_to_hbm [thread:$0]  %s155, 128, %s3, [#allocation4]
    $region33: #{tpu_custom_call.1} parent=1 // pred_fallthru
      _
    // Predicated region
    $region34: #{tpu_custom_call.1} parent=1 // pred_check
      _
    $region35: #{tpu_custom_call.1} parent=1 // pred_check_branch
      %159 = sbr.rel (0) target = $region37
    $region36: #{tpu_custom_call.1} parent=1 // pred_region
      %160 = dma.done [#allocation4], 128
    $region37: #{tpu_custom_call.1} parent=1 // pred_fallthru
      _
    %161 = vsyncpa [#allocation3], 1
    %162 = vsyncpa [#allocation6], 1
    %163 = vsyncpa [#allocation4], 1

</llo_original>
